<compile_context>
chip_gen: v5e
topology: v5e:2x2
jax: 0.10.0
libtpu: 0.0.40
codegen_flags: <defaults>
</compile_context>

<pallas_src>
import jax
import jax.numpy as jnp
from jax import lax
from jax.experimental import pallas as pl
from jax.experimental.pallas import tpu as pltpu

_MXU_DTYPE = jnp.bfloat16  # matmul operand dtype; accumulation stays f32


# ------------------------- fused Pallas kernel ------------------------------

def _make_fused_kernel(batch, block_cfgs):
    """Builds the fused kernel (static unroll over batch, blocks and taps)."""
    n_blocks = len(block_cfgs)

    def kernel(*refs):
        # refs: x, (w, bias) * n_blocks, head_w, head_b, out
        x_ref = refs[0]
        w_refs = [refs[1 + 2 * i] for i in range(n_blocks)]
        b_refs = [refs[2 + 2 * i] for i in range(n_blocks)]
        head_w_ref = refs[1 + 2 * n_blocks]
        head_b_ref = refs[2 + 2 * n_blocks]
        o_ref = refs[3 + 2 * n_blocks]

        outs = []
        for b in range(batch):                      # tiny batch: static unroll
            act = x_ref[b]                          # [C_in, L] load (leading axis)
            for blk, cfg in enumerate(block_cfgs):
                K, dil, pad = cfg["kernel_size"], cfg["dilation"], cfg["padding"]
                cout = cfg["out_channels"]
                cin_blk, lb = act.shape
                lane = lax.broadcasted_iota(jnp.int32, (cin_blk, lb), 1)
                acc = jnp.zeros((cout, lb), jnp.float32)
                for k in range(K):                  # K shifted/accumulated matmuls
                    s = k * dil - pad               # static per-tap shift
                    if s == 0:
                        xk = act
                    else:
                        shifted = pltpu.roll(act, shift=(-s) % lb, axis=1)
                        valid = (lane >= -s) & (lane < lb - s)   # zero-padding mask
                        xk = jnp.where(valid, shifted, jnp.zeros_like(shifted))
                    acc = acc + jnp.dot(
                        w_refs[blk][k].astype(_MXU_DTYPE),       # [Cout, Cin]
                        xk.astype(_MXU_DTYPE),                   # [Cin, L]
                        preferred_element_type=jnp.float32)
                # BN already folded into W/bias; Dropout = identity in eval.
                act = jnp.maximum(acc + b_refs[blk][...], 0.0)   # [Cout, L]
            # AdaptiveAvgPool1d + Linear folded into one VPU weighted sum.
            outs.append(jnp.sum(act * head_w_ref[...], keepdims=True))  # [1, 1]
        out = jnp.concatenate(outs, axis=0) + head_b_ref[...]           # [B, 1]
        o_ref[...] = out.astype(o_ref.dtype)

    return kernel


# ------------------------------ wrapper --------------------------------------

def conv1d_model_forward(x, block_params, block_weights, lin_w, lin_b,
                         pooling_size, eps=1e-5):
    """Conv1DModel.forward (eval mode), fully fused into one pallas_call."""
    B, c_in, L = x.shape
    kernel_args = [x]
    block_cfgs = []
    c_cur, l_cur = c_in, L

    for p, (w, cbias, gamma, beta) in zip(block_params, block_weights):
        cout, cin_w, K = w.shape
        assert p["groups"] == 1      # TODO(synk): grouped Conv1d not implemented
        assert p["stride"] == 1      # TODO(synk): strided Conv1d not implemented
        # 'same'-length conv only (holds for this config): L_out == L_in
        assert p["dilation"] * (K - 1) == 2 * p["padding"]
        # Fold eval-mode BatchNorm (running_mean=0, running_var=1) into W / bias.
        # TODO(synk): training-mode BN (batch stats) and Dropout masking not implemented.
        scale = gamma / jnp.sqrt(1.0 + eps)                            # [Cout]
        w_folded = (w * scale[:, None, None]).transpose(2, 0, 1)       # [K, Cout, Cin]
        bias_folded = (cbias * scale + beta)[:, None]                  # [Cout, 1]
        kernel_args += [w_folded.astype(jnp.float32),
                        bias_folded.astype(jnp.float32)]
        block_cfgs.append(dict(kernel_size=K, dilation=p["dilation"],
                               padding=p["padding"], out_channels=cout))
        c_cur = cout  # length unchanged ('same' conv)

    # Fold AdaptiveAvgPool1d(P) + flatten + Linear(C*P, 1) into a [C, L] map:
    # out = sum_{c,l} feat[c,l] * lin_w[c*P + l//W] / W + lin_b,  W = L // P.
    assert l_cur % pooling_size == 0  # TODO(synk): non-divisible adaptive pool unsupported
    win = l_cur // pooling_size
    head_w = jnp.repeat(lin_w.reshape(c_cur, pooling_size), win, axis=1) / win  # [C, L]
    head_b = lin_b.reshape(1, 1).astype(jnp.float32)
    kernel_args += [head_w.astype(jnp.float32), head_b]

    kernel = _make_fused_kernel(B, block_cfgs)
    vmem = pl.BlockSpec(memory_space=pltpu.MemorySpace.VMEM)
    return pl.pallas_call(
        kernel,
        out_shape=jax.ShapeDtypeStruct((B, 1), jnp.float32),
        in_specs=[vmem] * len(kernel_args),
        out_specs=vmem,
    )(*kernel_args)


# ------------------------------- main ----------------------------------------

if __name__ == "__main__":
    key = jax.random.PRNGKey(0)

    block_params = [
        dict(in_channels=4, out_channels=8, kernel_size=3, stride=1,
             padding=1, dilation=1, groups=1, drop_prob=0.1),
        dict(in_channels=8, out_channels=16, kernel_size=3, stride=1,
             padding=1, dilation=1, groups=1, drop_prob=0.1),
    ]
    pooling_size = 4

    block_weights = []
    for p in block_params:
        key, k1, k2, k3, k4 = jax.random.split(key, 5)
        cout = p["out_channels"]
        cin = p["in_channels"] // p["groups"]
        K = p["kernel_size"]
        w = 0.1 * jax.random.normal(k1, (cout, cin, K), jnp.float32)      # Conv1d.weight
        b = 0.1 * jax.random.normal(k2, (cout,), jnp.float32)             # Conv1d.bias
        gamma = 1.0 + 0.1 * jax.random.normal(k3, (cout,), jnp.float32)   # BN.weight
        beta = 0.1 * jax.random.normal(k4, (cout,), jnp.float32)          # BN.bias
        block_weights.append((w, b, gamma, beta))

    key, k5, k6, kx = jax.random.split(key, 4)
    c_last = block_params[-1]["out_channels"]
    lin_w = 0.1 * jax.random.normal(k5, (1, c_last * pooling_size), jnp.float32)  # Linear.weight
    lin_b = 0.1 * jax.random.normal(k6, (1,), jnp.float32)                        # Linear.bias

    x = jax.random.normal(kx, (2, 4, 16), jnp.float32)   # [B, C_in, L] (PyTorch NCL)

    out = conv1d_model_forward(x, block_params, block_weights, lin_w, lin_b,
                               pooling_size)
    out = jax.block_until_ready(out)
    assert out.shape == (2, 1)
    print("KERNEL_OK")
</pallas_src>

<mosaic_0001>
module attributes {stable_mosaic.version = 11 : i64} {
  func.func @kernel(%arg0: memref<2x4x16xf32, #tpu.memory_space<vmem>>, %arg1: memref<3x8x4xf32, #tpu.memory_space<vmem>>, %arg2: memref<8x1xf32, #tpu.memory_space<vmem>>, %arg3: memref<3x16x8xf32, #tpu.memory_space<vmem>>, %arg4: memref<16x1xf32, #tpu.memory_space<vmem>>, %arg5: memref<16x16xf32, #tpu.memory_space<vmem>>, %arg6: memref<1x1xf32, #tpu.memory_space<vmem>>, %arg7: memref<2x1xf32, #tpu.memory_space<vmem>>) attributes {dimension_semantics = [], scalar_prefetch = 0 : i64, scratch_operands = 0 : i64, tpu.core_type = #tpu.core_type<tc>} {
    %c0 = arith.constant 0 : index
    %c0_0 = arith.constant 0 : index
    %c0_1 = arith.constant 0 : index
    %0 = vector.load %arg0[%c0, %c0_0, %c0_1] : memref<2x4x16xf32, #tpu.memory_space<vmem>>, vector<1x4x16xf32>
    %1 = vector.shape_cast %0 : vector<1x4x16xf32> to vector<4x16xf32>
    %2 = tpu.iota {dimensions = array<i32: 1>} : vector<4x16xi32>
    %cst = arith.constant 0.000000e+00 : f32
    %3 = vector.broadcast %cst : f32 to vector<8x16xf32>
    %c1_i32 = arith.constant 1 : i32
    %4 = tpu.dynamic_rotate %1 by %c1_i32 dim 1 : vector<4x16xf32>, i32 -> vector<4x16xf32>
    %c1_i32_2 = arith.constant 1 : i32
    %5 = vector.broadcast %c1_i32_2 : i32 to vector<4x16xi32>
    %6 = arith.cmpi sge, %2, %5 : vector<4x16xi32>
    %c17_i32 = arith.constant 17 : i32
    %7 = vector.broadcast %c17_i32 : i32 to vector<4x16xi32>
    %8 = arith.cmpi slt, %2, %7 : vector<4x16xi32>
    %9 = arith.andi %6, %8 : vector<4x16xi1>
    %cst_3 = arith.constant 0.000000e+00 : f32
    %10 = vector.broadcast %cst_3 : f32 to vector<4x16xf32>
    %11 = arith.select %9, %4, %10 : vector<4x16xi1>, vector<4x16xf32>
    %c0_4 = arith.constant 0 : index
    %c0_5 = arith.constant 0 : index
    %c0_6 = arith.constant 0 : index
    %12 = vector.load %arg1[%c0_4, %c0_5, %c0_6] : memref<3x8x4xf32, #tpu.memory_space<vmem>>, vector<1x8x4xf32>
    %13 = vector.shape_cast %12 : vector<1x8x4xf32> to vector<8x4xf32>
    %14 = arith.truncf %13 : vector<8x4xf32> to vector<8x4xbf16>
    %15 = arith.truncf %11 : vector<4x16xf32> to vector<4x16xbf16>
    %cst_7 = arith.constant dense<0.000000e+00> : vector<8x16xf32>
    %16 = tpu.matmul %14, %15, %cst_7 {dimension_numbers = #tpu.dot_dimension_numbers<[1], [0], [0], [1], [0, 0, 1, 1], [], []>} : vector<8x4xbf16>, vector<4x16xbf16>, vector<8x16xf32> -> vector<8x16xf32>
    %17 = arith.addf %3, %16 : vector<8x16xf32>
    %c1 = arith.constant 1 : index
    %c0_8 = arith.constant 0 : index
    %c0_9 = arith.constant 0 : index
    %18 = vector.load %arg1[%c1, %c0_8, %c0_9] : memref<3x8x4xf32, #tpu.memory_space<vmem>>, vector<1x8x4xf32>
    %19 = vector.shape_cast %18 : vector<1x8x4xf32> to vector<8x4xf32>
    %20 = arith.truncf %19 : vector<8x4xf32> to vector<8x4xbf16>
    %21 = arith.truncf %1 : vector<4x16xf32> to vector<4x16xbf16>
    %cst_10 = arith.constant dense<0.000000e+00> : vector<8x16xf32>
    %22 = tpu.matmul %20, %21, %cst_10 {dimension_numbers = #tpu.dot_dimension_numbers<[1], [0], [0], [1], [0, 0, 1, 1], [], []>} : vector<8x4xbf16>, vector<4x16xbf16>, vector<8x16xf32> -> vector<8x16xf32>
    %23 = arith.addf %17, %22 : vector<8x16xf32>
    %c15_i32 = arith.constant 15 : i32
    %24 = tpu.dynamic_rotate %1 by %c15_i32 dim 1 : vector<4x16xf32>, i32 -> vector<4x16xf32>
    %c-1_i32 = arith.constant -1 : i32
    %25 = vector.broadcast %c-1_i32 : i32 to vector<4x16xi32>
    %26 = arith.cmpi sge, %2, %25 : vector<4x16xi32>
    %c15_i32_11 = arith.constant 15 : i32
    %27 = vector.broadcast %c15_i32_11 : i32 to vector<4x16xi32>
    %28 = arith.cmpi slt, %2, %27 : vector<4x16xi32>
    %29 = arith.andi %26, %28 : vector<4x16xi1>
    %cst_12 = arith.constant 0.000000e+00 : f32
    %30 = vector.broadcast %cst_12 : f32 to vector<4x16xf32>
    %31 = arith.select %29, %24, %30 : vector<4x16xi1>, vector<4x16xf32>
    %c2 = arith.constant 2 : index
    %c0_13 = arith.constant 0 : index
    %c0_14 = arith.constant 0 : index
    %32 = vector.load %arg1[%c2, %c0_13, %c0_14] : memref<3x8x4xf32, #tpu.memory_space<vmem>>, vector<1x8x4xf32>
    %33 = vector.shape_cast %32 : vector<1x8x4xf32> to vector<8x4xf32>
    %34 = arith.truncf %33 : vector<8x4xf32> to vector<8x4xbf16>
    %35 = arith.truncf %31 : vector<4x16xf32> to vector<4x16xbf16>
    %cst_15 = arith.constant dense<0.000000e+00> : vector<8x16xf32>
    %36 = tpu.matmul %34, %35, %cst_15 {dimension_numbers = #tpu.dot_dimension_numbers<[1], [0], [0], [1], [0, 0, 1, 1], [], []>} : vector<8x4xbf16>, vector<4x16xbf16>, vector<8x16xf32> -> vector<8x16xf32>
    %37 = arith.addf %23, %36 : vector<8x16xf32>
    %c0_16 = arith.constant 0 : index
    %c0_17 = arith.constant 0 : index
    %38 = vector.load %arg2[%c0_16, %c0_17] : memref<8x1xf32, #tpu.memory_space<vmem>>, vector<8x1xf32>
    %39 = vector.broadcast %38 : vector<8x1xf32> to vector<8x16xf32>
    %40 = arith.addf %37, %39 : vector<8x16xf32>
    %cst_18 = arith.constant 0.000000e+00 : f32
    %41 = vector.broadcast %cst_18 : f32 to vector<8x16xf32>
    %42 = arith.maximumf %40, %41 : vector<8x16xf32>
    %43 = tpu.iota {dimensions = array<i32: 1>} : vector<8x16xi32>
    %cst_19 = arith.constant 0.000000e+00 : f32
    %44 = vector.broadcast %cst_19 : f32 to vector<16x16xf32>
    %c1_i32_20 = arith.constant 1 : i32
    %45 = tpu.dynamic_rotate %42 by %c1_i32_20 dim 1 : vector<8x16xf32>, i32 -> vector<8x16xf32>
    %c1_i32_21 = arith.constant 1 : i32
    %46 = vector.broadcast %c1_i32_21 : i32 to vector<8x16xi32>
    %47 = arith.cmpi sge, %43, %46 : vector<8x16xi32>
    %c17_i32_22 = arith.constant 17 : i32
    %48 = vector.broadcast %c17_i32_22 : i32 to vector<8x16xi32>
    %49 = arith.cmpi slt, %43, %48 : vector<8x16xi32>
    %50 = arith.andi %47, %49 : vector<8x16xi1>
    %cst_23 = arith.constant 0.000000e+00 : f32
    %51 = vector.broadcast %cst_23 : f32 to vector<8x16xf32>
    %52 = arith.select %50, %45, %51 : vector<8x16xi1>, vector<8x16xf32>
    %c0_24 = arith.constant 0 : index
    %c0_25 = arith.constant 0 : index
    %c0_26 = arith.constant 0 : index
    %53 = vector.load %arg3[%c0_24, %c0_25, %c0_26] : memref<3x16x8xf32, #tpu.memory_space<vmem>>, vector<1x16x8xf32>
    %54 = vector.shape_cast %53 : vector<1x16x8xf32> to vector<16x8xf32>
    %55 = arith.truncf %54 : vector<16x8xf32> to vector<16x8xbf16>
    %56 = arith.truncf %52 : vector<8x16xf32> to vector<8x16xbf16>
    %cst_27 = arith.constant dense<0.000000e+00> : vector<16x16xf32>
    %57 = tpu.matmul %55, %56, %cst_27 {dimension_numbers = #tpu.dot_dimension_numbers<[1], [0], [0], [1], [0, 0, 1, 1], [], []>} : vector<16x8xbf16>, vector<8x16xbf16>, vector<16x16xf32> -> vector<16x16xf32>
    %58 = arith.addf %44, %57 : vector<16x16xf32>
    %c1_28 = arith.constant 1 : index
    %c0_29 = arith.constant 0 : index
    %c0_30 = arith.constant 0 : index
    %59 = vector.load %arg3[%c1_28, %c0_29, %c0_30] : memref<3x16x8xf32, #tpu.memory_space<vmem>>, vector<1x16x8xf32>
    %60 = vector.shape_cast %59 : vector<1x16x8xf32> to vector<16x8xf32>
    %61 = arith.truncf %60 : vector<16x8xf32> to vector<16x8xbf16>
    %62 = arith.truncf %42 : vector<8x16xf32> to vector<8x16xbf16>
    %cst_31 = arith.constant dense<0.000000e+00> : vector<16x16xf32>
    %63 = tpu.matmul %61, %62, %cst_31 {dimension_numbers = #tpu.dot_dimension_numbers<[1], [0], [0], [1], [0, 0, 1, 1], [], []>} : vector<16x8xbf16>, vector<8x16xbf16>, vector<16x16xf32> -> vector<16x16xf32>
    %64 = arith.addf %58, %63 : vector<16x16xf32>
    %c15_i32_32 = arith.constant 15 : i32
    %65 = tpu.dynamic_rotate %42 by %c15_i32_32 dim 1 : vector<8x16xf32>, i32 -> vector<8x16xf32>
    %c-1_i32_33 = arith.constant -1 : i32
    %66 = vector.broadcast %c-1_i32_33 : i32 to vector<8x16xi32>
    %67 = arith.cmpi sge, %43, %66 : vector<8x16xi32>
    %c15_i32_34 = arith.constant 15 : i32
    %68 = vector.broadcast %c15_i32_34 : i32 to vector<8x16xi32>
    %69 = arith.cmpi slt, %43, %68 : vector<8x16xi32>
    %70 = arith.andi %67, %69 : vector<8x16xi1>
    %cst_35 = arith.constant 0.000000e+00 : f32
    %71 = vector.broadcast %cst_35 : f32 to vector<8x16xf32>
    %72 = arith.select %70, %65, %71 : vector<8x16xi1>, vector<8x16xf32>
    %c2_36 = arith.constant 2 : index
    %c0_37 = arith.constant 0 : index
    %c0_38 = arith.constant 0 : index
    %73 = vector.load %arg3[%c2_36, %c0_37, %c0_38] : memref<3x16x8xf32, #tpu.memory_space<vmem>>, vector<1x16x8xf32>
    %74 = vector.shape_cast %73 : vector<1x16x8xf32> to vector<16x8xf32>
    %75 = arith.truncf %74 : vector<16x8xf32> to vector<16x8xbf16>
    %76 = arith.truncf %72 : vector<8x16xf32> to vector<8x16xbf16>
    %cst_39 = arith.constant dense<0.000000e+00> : vector<16x16xf32>
    %77 = tpu.matmul %75, %76, %cst_39 {dimension_numbers = #tpu.dot_dimension_numbers<[1], [0], [0], [1], [0, 0, 1, 1], [], []>} : vector<16x8xbf16>, vector<8x16xbf16>, vector<16x16xf32> -> vector<16x16xf32>
    %78 = arith.addf %64, %77 : vector<16x16xf32>
    %c0_40 = arith.constant 0 : index
    %c0_41 = arith.constant 0 : index
    %79 = vector.load %arg4[%c0_40, %c0_41] : memref<16x1xf32, #tpu.memory_space<vmem>>, vector<16x1xf32>
    %80 = vector.broadcast %79 : vector<16x1xf32> to vector<16x16xf32>
    %81 = arith.addf %78, %80 : vector<16x16xf32>
    %cst_42 = arith.constant 0.000000e+00 : f32
    %82 = vector.broadcast %cst_42 : f32 to vector<16x16xf32>
    %83 = arith.maximumf %81, %82 : vector<16x16xf32>
    %c0_43 = arith.constant 0 : index
    %c0_44 = arith.constant 0 : index
    %84 = vector.load %arg5[%c0_43, %c0_44] : memref<16x16xf32, #tpu.memory_space<vmem>>, vector<16x16xf32>
    %85 = arith.mulf %83, %84 : vector<16x16xf32>
    %86 = vector.shape_cast %85 : vector<16x16xf32> to vector<1x16x16xf32>
    %cst_45 = arith.constant dense<0.000000e+00> : vector<1xf32>
    %87 = vector.multi_reduction <add>, %86, %cst_45 [1, 2] : vector<1x16x16xf32> to vector<1xf32>
    %88 = vector.shape_cast %87 : vector<1xf32> to vector<1x1x1xf32>
    %89 = vector.extract %88[0, 0, 0] : f32 from vector<1x1x1xf32>
    %90 = vector.broadcast %89 : f32 to vector<1x1xf32>
    %c1_46 = arith.constant 1 : index
    %c0_47 = arith.constant 0 : index
    %c0_48 = arith.constant 0 : index
    %91 = vector.load %arg0[%c1_46, %c0_47, %c0_48] : memref<2x4x16xf32, #tpu.memory_space<vmem>>, vector<1x4x16xf32>
    %92 = vector.shape_cast %91 : vector<1x4x16xf32> to vector<4x16xf32>
    %93 = tpu.iota {dimensions = array<i32: 1>} : vector<4x16xi32>
    %cst_49 = arith.constant 0.000000e+00 : f32
    %94 = vector.broadcast %cst_49 : f32 to vector<8x16xf32>
    %c1_i32_50 = arith.constant 1 : i32
    %95 = tpu.dynamic_rotate %92 by %c1_i32_50 dim 1 : vector<4x16xf32>, i32 -> vector<4x16xf32>
    %c1_i32_51 = arith.constant 1 : i32
    %96 = vector.broadcast %c1_i32_51 : i32 to vector<4x16xi32>
    %97 = arith.cmpi sge, %93, %96 : vector<4x16xi32>
    %c17_i32_52 = arith.constant 17 : i32
    %98 = vector.broadcast %c17_i32_52 : i32 to vector<4x16xi32>
    %99 = arith.cmpi slt, %93, %98 : vector<4x16xi32>
    %100 = arith.andi %97, %99 : vector<4x16xi1>
    %cst_53 = arith.constant 0.000000e+00 : f32
    %101 = vector.broadcast %cst_53 : f32 to vector<4x16xf32>
    %102 = arith.select %100, %95, %101 : vector<4x16xi1>, vector<4x16xf32>
    %c0_54 = arith.constant 0 : index
    %c0_55 = arith.constant 0 : index
    %c0_56 = arith.constant 0 : index
    %103 = vector.load %arg1[%c0_54, %c0_55, %c0_56] : memref<3x8x4xf32, #tpu.memory_space<vmem>>, vector<1x8x4xf32>
    %104 = vector.shape_cast %103 : vector<1x8x4xf32> to vector<8x4xf32>
    %105 = arith.truncf %104 : vector<8x4xf32> to vector<8x4xbf16>
    %106 = arith.truncf %102 : vector<4x16xf32> to vector<4x16xbf16>
    %cst_57 = arith.constant dense<0.000000e+00> : vector<8x16xf32>
    %107 = tpu.matmul %105, %106, %cst_57 {dimension_numbers = #tpu.dot_dimension_numbers<[1], [0], [0], [1], [0, 0, 1, 1], [], []>} : vector<8x4xbf16>, vector<4x16xbf16>, vector<8x16xf32> -> vector<8x16xf32>
    %108 = arith.addf %94, %107 : vector<8x16xf32>
    %c1_58 = arith.constant 1 : index
    %c0_59 = arith.constant 0 : index
    %c0_60 = arith.constant 0 : index
    %109 = vector.load %arg1[%c1_58, %c0_59, %c0_60] : memref<3x8x4xf32, #tpu.memory_space<vmem>>, vector<1x8x4xf32>
    %110 = vector.shape_cast %109 : vector<1x8x4xf32> to vector<8x4xf32>
    %111 = arith.truncf %110 : vector<8x4xf32> to vector<8x4xbf16>
    %112 = arith.truncf %92 : vector<4x16xf32> to vector<4x16xbf16>
    %cst_61 = arith.constant dense<0.000000e+00> : vector<8x16xf32>
    %113 = tpu.matmul %111, %112, %cst_61 {dimension_numbers = #tpu.dot_dimension_numbers<[1], [0], [0], [1], [0, 0, 1, 1], [], []>} : vector<8x4xbf16>, vector<4x16xbf16>, vector<8x16xf32> -> vector<8x16xf32>
    %114 = arith.addf %108, %113 : vector<8x16xf32>
    %c15_i32_62 = arith.constant 15 : i32
    %115 = tpu.dynamic_rotate %92 by %c15_i32_62 dim 1 : vector<4x16xf32>, i32 -> vector<4x16xf32>
    %c-1_i32_63 = arith.constant -1 : i32
    %116 = vector.broadcast %c-1_i32_63 : i32 to vector<4x16xi32>
    %117 = arith.cmpi sge, %93, %116 : vector<4x16xi32>
    %c15_i32_64 = arith.constant 15 : i32
    %118 = vector.broadcast %c15_i32_64 : i32 to vector<4x16xi32>
    %119 = arith.cmpi slt, %93, %118 : vector<4x16xi32>
    %120 = arith.andi %117, %119 : vector<4x16xi1>
    %cst_65 = arith.constant 0.000000e+00 : f32
    %121 = vector.broadcast %cst_65 : f32 to vector<4x16xf32>
    %122 = arith.select %120, %115, %121 : vector<4x16xi1>, vector<4x16xf32>
    %c2_66 = arith.constant 2 : index
    %c0_67 = arith.constant 0 : index
    %c0_68 = arith.constant 0 : index
    %123 = vector.load %arg1[%c2_66, %c0_67, %c0_68] : memref<3x8x4xf32, #tpu.memory_space<vmem>>, vector<1x8x4xf32>
    %124 = vector.shape_cast %123 : vector<1x8x4xf32> to vector<8x4xf32>
    %125 = arith.truncf %124 : vector<8x4xf32> to vector<8x4xbf16>
    %126 = arith.truncf %122 : vector<4x16xf32> to vector<4x16xbf16>
    %cst_69 = arith.constant dense<0.000000e+00> : vector<8x16xf32>
    %127 = tpu.matmul %125, %126, %cst_69 {dimension_numbers = #tpu.dot_dimension_numbers<[1], [0], [0], [1], [0, 0, 1, 1], [], []>} : vector<8x4xbf16>, vector<4x16xbf16>, vector<8x16xf32> -> vector<8x16xf32>
    %128 = arith.addf %114, %127 : vector<8x16xf32>
    %c0_70 = arith.constant 0 : index
    %c0_71 = arith.constant 0 : index
    %129 = vector.load %arg2[%c0_70, %c0_71] : memref<8x1xf32, #tpu.memory_space<vmem>>, vector<8x1xf32>
    %130 = vector.broadcast %129 : vector<8x1xf32> to vector<8x16xf32>
    %131 = arith.addf %128, %130 : vector<8x16xf32>
    %cst_72 = arith.constant 0.000000e+00 : f32
    %132 = vector.broadcast %cst_72 : f32 to vector<8x16xf32>
    %133 = arith.maximumf %131, %132 : vector<8x16xf32>
    %134 = tpu.iota {dimensions = array<i32: 1>} : vector<8x16xi32>
    %cst_73 = arith.constant 0.000000e+00 : f32
    %135 = vector.broadcast %cst_73 : f32 to vector<16x16xf32>
    %c1_i32_74 = arith.constant 1 : i32
    %136 = tpu.dynamic_rotate %133 by %c1_i32_74 dim 1 : vector<8x16xf32>, i32 -> vector<8x16xf32>
    %c1_i32_75 = arith.constant 1 : i32
    %137 = vector.broadcast %c1_i32_75 : i32 to vector<8x16xi32>
    %138 = arith.cmpi sge, %134, %137 : vector<8x16xi32>
    %c17_i32_76 = arith.constant 17 : i32
    %139 = vector.broadcast %c17_i32_76 : i32 to vector<8x16xi32>
    %140 = arith.cmpi slt, %134, %139 : vector<8x16xi32>
    %141 = arith.andi %138, %140 : vector<8x16xi1>
    %cst_77 = arith.constant 0.000000e+00 : f32
    %142 = vector.broadcast %cst_77 : f32 to vector<8x16xf32>
    %143 = arith.select %141, %136, %142 : vector<8x16xi1>, vector<8x16xf32>
    %c0_78 = arith.constant 0 : index
    %c0_79 = arith.constant 0 : index
    %c0_80 = arith.constant 0 : index
    %144 = vector.load %arg3[%c0_78, %c0_79, %c0_80] : memref<3x16x8xf32, #tpu.memory_space<vmem>>, vector<1x16x8xf32>
    %145 = vector.shape_cast %144 : vector<1x16x8xf32> to vector<16x8xf32>
    %146 = arith.truncf %145 : vector<16x8xf32> to vector<16x8xbf16>
    %147 = arith.truncf %143 : vector<8x16xf32> to vector<8x16xbf16>
    %cst_81 = arith.constant dense<0.000000e+00> : vector<16x16xf32>
    %148 = tpu.matmul %146, %147, %cst_81 {dimension_numbers = #tpu.dot_dimension_numbers<[1], [0], [0], [1], [0, 0, 1, 1], [], []>} : vector<16x8xbf16>, vector<8x16xbf16>, vector<16x16xf32> -> vector<16x16xf32>
    %149 = arith.addf %135, %148 : vector<16x16xf32>
    %c1_82 = arith.constant 1 : index
    %c0_83 = arith.constant 0 : index
    %c0_84 = arith.constant 0 : index
    %150 = vector.load %arg3[%c1_82, %c0_83, %c0_84] : memref<3x16x8xf32, #tpu.memory_space<vmem>>, vector<1x16x8xf32>
    %151 = vector.shape_cast %150 : vector<1x16x8xf32> to vector<16x8xf32>
    %152 = arith.truncf %151 : vector<16x8xf32> to vector<16x8xbf16>
    %153 = arith.truncf %133 : vector<8x16xf32> to vector<8x16xbf16>
    %cst_85 = arith.constant dense<0.000000e+00> : vector<16x16xf32>
    %154 = tpu.matmul %152, %153, %cst_85 {dimension_numbers = #tpu.dot_dimension_numbers<[1], [0], [0], [1], [0, 0, 1, 1], [], []>} : vector<16x8xbf16>, vector<8x16xbf16>, vector<16x16xf32> -> vector<16x16xf32>
    %155 = arith.addf %149, %154 : vector<16x16xf32>
    %c15_i32_86 = arith.constant 15 : i32
    %156 = tpu.dynamic_rotate %133 by %c15_i32_86 dim 1 : vector<8x16xf32>, i32 -> vector<8x16xf32>
    %c-1_i32_87 = arith.constant -1 : i32
    %157 = vector.broadcast %c-1_i32_87 : i32 to vector<8x16xi32>
    %158 = arith.cmpi sge, %134, %157 : vector<8x16xi32>
    %c15_i32_88 = arith.constant 15 : i32
    %159 = vector.broadcast %c15_i32_88 : i32 to vector<8x16xi32>
    %160 = arith.cmpi slt, %134, %159 : vector<8x16xi32>
    %161 = arith.andi %158, %160 : vector<8x16xi1>
    %cst_89 = arith.constant 0.000000e+00 : f32
    %162 = vector.broadcast %cst_89 : f32 to vector<8x16xf32>
    %163 = arith.select %161, %156, %162 : vector<8x16xi1>, vector<8x16xf32>
    %c2_90 = arith.constant 2 : index
    %c0_91 = arith.constant 0 : index
    %c0_92 = arith.constant 0 : index
    %164 = vector.load %arg3[%c2_90, %c0_91, %c0_92] : memref<3x16x8xf32, #tpu.memory_space<vmem>>, vector<1x16x8xf32>
    %165 = vector.shape_cast %164 : vector<1x16x8xf32> to vector<16x8xf32>
    %166 = arith.truncf %165 : vector<16x8xf32> to vector<16x8xbf16>
    %167 = arith.truncf %163 : vector<8x16xf32> to vector<8x16xbf16>
    %cst_93 = arith.constant dense<0.000000e+00> : vector<16x16xf32>
    %168 = tpu.matmul %166, %167, %cst_93 {dimension_numbers = #tpu.dot_dimension_numbers<[1], [0], [0], [1], [0, 0, 1, 1], [], []>} : vector<16x8xbf16>, vector<8x16xbf16>, vector<16x16xf32> -> vector<16x16xf32>
    %169 = arith.addf %155, %168 : vector<16x16xf32>
    %c0_94 = arith.constant 0 : index
    %c0_95 = arith.constant 0 : index
    %170 = vector.load %arg4[%c0_94, %c0_95] : memref<16x1xf32, #tpu.memory_space<vmem>>, vector<16x1xf32>
    %171 = vector.broadcast %170 : vector<16x1xf32> to vector<16x16xf32>
    %172 = arith.addf %169, %171 : vector<16x16xf32>
    %cst_96 = arith.constant 0.000000e+00 : f32
    %173 = vector.broadcast %cst_96 : f32 to vector<16x16xf32>
    %174 = arith.maximumf %172, %173 : vector<16x16xf32>
    %c0_97 = arith.constant 0 : index
    %c0_98 = arith.constant 0 : index
    %175 = vector.load %arg5[%c0_97, %c0_98] : memref<16x16xf32, #tpu.memory_space<vmem>>, vector<16x16xf32>
    %176 = arith.mulf %174, %175 : vector<16x16xf32>
    %177 = vector.shape_cast %176 : vector<16x16xf32> to vector<1x16x16xf32>
    %cst_99 = arith.constant dense<0.000000e+00> : vector<1xf32>
    %178 = vector.multi_reduction <add>, %177, %cst_99 [1, 2] : vector<1x16x16xf32> to vector<1xf32>
    %179 = vector.shape_cast %178 : vector<1xf32> to vector<1x1x1xf32>
    %180 = vector.extract %179[0, 0, 0] : f32 from vector<1x1x1xf32>
    %181 = vector.broadcast %180 : f32 to vector<1x1xf32>
    %182 = tpu.concatenate %90, %181 in 0 : vector<1x1xf32>, vector<1x1xf32> -> vector<2x1xf32>
    %c0_100 = arith.constant 0 : index
    %c0_101 = arith.constant 0 : index
    %183 = vector.load %arg6[%c0_100, %c0_101] : memref<1x1xf32, #tpu.memory_space<vmem>>, vector<1x1xf32>
    %184 = vector.broadcast %183 : vector<1x1xf32> to vector<2x1xf32>
    %185 = arith.addf %182, %184 : vector<2x1xf32>
    %c0_102 = arith.constant 0 : index
    %c0_103 = arith.constant 0 : index
    %186 = vector.load %arg7[%c0_102, %c0_103] : memref<2x1xf32, #tpu.memory_space<vmem>>, vector<2x1xf32>
    tpu.vector_store %arg7[%c0_102, %c0_103], %185 {strides = array<i32>} : memref<2x1xf32, #tpu.memory_space<vmem>>, vector<2x1xf32>,
    return
  }
}

</mosaic_0001>

<llo_original>
// kernel: tpu_custom_call.1
$region0: #{tpu_custom_call.1}
  #allocation0 [shape = 'u32[]', space=smem, size = 0x4, offset = 0x4, fixed_abs, tag = 'smem constant byte address 0x4 - core index']
  #allocation1 [shape = 'u32[72,128]{1,0:T(1,128)}', space=vmem, size = 0x9000, scoped, tag = 'internal scratch']
  #allocation2 [shape = 'f32[1,1]{1,0:T(1,128)S(1)}', space=vmem, size = 0x200, scoped, tag = 'scoped memory for tpu_custom_call.1']
  %s0 = inlined_call_operand.vmem [shape: f32[2,4,16], index: 0, kind: input, shape index: {}]
  %s1 = inlined_call_operand.vmem [shape: f32[3,8,4], index: 1, kind: input, shape index: {}]
  %s2 = inlined_call_operand.vmem [shape: f32[8,1], index: 2, kind: input, shape index: {}]
  %s3 = inlined_call_operand.vmem [shape: f32[3,16,8], index: 3, kind: input, shape index: {}]
  %s4 = inlined_call_operand.vmem [shape: f32[16,1], index: 4, kind: input, shape index: {}]
  %s5 = inlined_call_operand.vmem [shape: f32[16,16], index: 5, kind: input, shape index: {}]
  %s6 = inlined_call_operand.<no memory space> [shape: f32[1,1], index: 6, kind: input, shape index: {}]
  %s7 = inlined_call_operand.vmem [shape: f32[2,1], index: 7, kind: output, shape index: {}]
  %s8 = sld [smem:[#allocation0]]
  $region38: #{tpu_custom_call.1} parent=0
    _
  %s10 = ssub.s32 1, %s8
  %s11 = scalar_select 0, %s10, %s8
  %v12 = vstv %s6
  %13 = vst [vmem:[#allocation2] sm:$0x1] %v12
  // Predicated region
  $region2: #{tpu_custom_call.1} parent=0 // pred_check
    _
  $region3: #{tpu_custom_call.1} parent=0 // pred_check_branch
    %15 = sbr.rel (0) target = $region5
  $region4: #{tpu_custom_call.1} parent=0 // pred_region
    _
  $region5: #{tpu_custom_call.1} parent=0 // pred_fallthru
    _
  // Predicated region
  $region6: #{tpu_custom_call.1} parent=0 // pred_check
    _
  $region7: #{tpu_custom_call.1} parent=0 // pred_check_branch
    %17 = sbr.rel (0) target = $region9
  $region8: #{tpu_custom_call.1} parent=0 // pred_region
    _
  $region9: #{tpu_custom_call.1} parent=0 // pred_fallthru
    _
  // Predicated region
  $region10: #{tpu_custom_call.1} parent=0 // pred_check
    _
  $region11: #{tpu_custom_call.1} parent=0 // pred_check_branch
    %19 = sbr.rel (0) target = $region13
  $region12: #{tpu_custom_call.1} parent=0 // pred_region
    _
  $region13: #{tpu_custom_call.1} parent=0 // pred_fallthru
    _
  // Predicated region
  $region14: #{tpu_custom_call.1} parent=0 // pred_check
    _
  $region15: #{tpu_custom_call.1} parent=0 // pred_check_branch
    %21 = sbr.rel (0) target = $region17
  $region16: #{tpu_custom_call.1} parent=0 // pred_region
    _
  $region17: #{tpu_custom_call.1} parent=0 // pred_fallthru
    _
  // Predicated region
  $region18: #{tpu_custom_call.1} parent=0 // pred_check
    _
  $region19: #{tpu_custom_call.1} parent=0 // pred_check_branch
    %23 = sbr.rel (0) target = $region21
  $region20: #{tpu_custom_call.1} parent=0 // pred_region
    _
  $region21: #{tpu_custom_call.1} parent=0 // pred_fallthru
    _
  // Predicated region
  $region22: #{tpu_custom_call.1} parent=0 // pred_check
    _
  $region23: #{tpu_custom_call.1} parent=0 // pred_check_branch
    %25 = sbr.rel (0) target = $region25
  $region24: #{tpu_custom_call.1} parent=0 // pred_region
    _
  $region25: #{tpu_custom_call.1} parent=0 // pred_fallthru
    _
  // Predicated region
  $region26: #{tpu_custom_call.1} parent=0 // pred_check
    _
  $region27: #{tpu_custom_call.1} parent=0 // pred_check_branch
    %27 = sbr.rel (0) target = $region29
  $region28: #{tpu_custom_call.1} parent=0 // pred_region
    _
  $region29: #{tpu_custom_call.1} parent=0 // pred_fallthru
    _
  %v29 = vld [vmem:[%s0] sm:$0xf]
  %v30 = vlaneseq
  %v31 = vand.u32 %v30, 127
  %vm32 = vcmask 1047680
  %33 = vrot.lane.b32.xlu0 %v29, 16
  %v34 = vpop.permute.xlu0 %33
  %v35 = vsel %vm32, %v34, %v29
  %36 = vrot.lane.b32.xlu0 %v35, 16
  %v37 = vpop.permute.xlu0 %36
  %v38 = vsel %vm32, %v37, %v29
  %vm39 = vcmp.ge.s32.totalorder %v31, 1
  %vm40 = vcmp.lt.s32.totalorder %v31, 17
  %vm41 = vmand %vm39, %vm40
  %43 = vrot.lane.b32.xlu0 %v38, 113
  %v44 = vpop.permute.xlu0 %43
  %v46 = vsel %vm41, %v44, 0.0
  %v47 = vld [vmem:[%s1] sm:$0xff]
  %v48 = vpack.c.bf16 %v47, %v47
  %v49 = vpack.c.bf16 %v46, %v46
  %s50 = scalar_lea.vmem %s1, 8
  %v51 = vld [vmem:[%s50] sm:$0xff]
  %v52 = vpack.c.bf16 %v51, %v51
  %v53 = vpack.c.bf16 %v29, %v29
  %vm54 = vcmask 31744
  %v56 = vsel %vm54, %v52, 0
  %vm58 = vcmask 1041408
  %v60 = vsel %vm58, %v53, 0
  %62 = vmatpush.bf16.msra.mxu0 0
  %63 = vmatpush.bf16.msra.mxu0 0
  %64 = vmatpush.bf16.msra.mxu0 0
  %65 = vmatpush.bf16.msra.mxu0 0
  %66 = vmatpush.bf16.msra.mxu0 0
  %67 = vmatpush.bf16.msra.mxu0 0
  %68 = vmatpush.bf16.msra.mxu0 0
  %69 = vmatpush.bf16.msra.mxu0 %v60
  %70 = vmatmul.bf16.gmra.mxu0 %v56
  %v71 = vpop.f32.mrf.mxu0
  %v72 = vadd.f32 0.0, %v71
  %v73 = vpop.f32.mrf.mxu0
  %74 = vdwg.mxu0
  %v76 = vsel %vm54, %v48, 0
  %v79 = vsel %vm58, %v49, 0
  %81 = vmatpush.bf16.msra.mxu0 0
  %82 = vmatpush.bf16.msra.mxu0 0
  %83 = vmatpush.bf16.msra.mxu0 0
  %84 = vmatpush.bf16.msra.mxu0 0
  %85 = vmatpush.bf16.msra.mxu0 0
  %86 = vmatpush.bf16.msra.mxu0 0
  %87 = vmatpush.bf16.msra.mxu0 0
  %88 = vmatpush.bf16.msra.mxu0 %v79
  %89 = vmatmul.bf16.gmra.mxu0 %v76
  %v90 = vpop.f32.mrf.mxu0
  %v91 = vadd.f32 %v72, %v90
  %v92 = vpop.f32.mrf.mxu0
  %93 = vdwg.mxu0
  %vm94 = vcmp.ge.s32.totalorder %v31, 4294967295
  %vm95 = vcmp.lt.s32.totalorder %v31, 15
  %vm96 = vmand %vm94, %vm95
  %97 = vrot.lane.b32.xlu0 %v38, 127
  %v98 = vpop.permute.xlu0 %97
  %v100 = vsel %vm96, %v98, 0.0
  %s101 = scalar_lea.vmem %s1, 16
  %v102 = vld [vmem:[%s101] sm:$0xff]
  %v103 = vpack.c.bf16 %v102, %v102
  %v104 = vpack.c.bf16 %v100, %v100
  %v106 = vsel %vm54, %v103, 0
  %v109 = vsel %vm58, %v104, 0
  %111 = vmatpush.bf16.msra.mxu0 0
  %112 = vmatpush.bf16.msra.mxu0 0
  %113 = vmatpush.bf16.msra.mxu0 0
  %114 = vmatpush.bf16.msra.mxu0 0
  %115 = vmatpush.bf16.msra.mxu0 0
  %116 = vmatpush.bf16.msra.mxu0 0
  %117 = vmatpush.bf16.msra.mxu0 0
  %118 = vmatpush.bf16.msra.mxu0 %v109
  %119 = vmatmul.bf16.gmra.mxu0 %v106
  %v120 = vpop.f32.mrf.mxu0
  %v121 = vadd.f32 0.0, %v120
  %v122 = vpop.f32.mrf.mxu0
  %123 = vdwg.mxu0
  %v124 = vadd.f32 %v91, %v121
  %v125 = vld [vmem:[%s2] sm:$0xff]
  %127 = vset.pattern.permute.xlu0 0
  %128 = vperm.xlu0 %127, %v125
  %v129 = vpop.permute.xlu0 %128
  %v131 = vadd.f32 %v124, %v129
  %v132 = vmax.f32 %v131, 0.0
  %133 = vrot.lane.b32.xlu0 %v132, 16
  %v134 = vpop.permute.xlu0 %133
  %v135 = vsel %vm32, %v134, %v132
  %136 = vrot.lane.b32.xlu0 %v135, 16
  %v137 = vpop.permute.xlu0 %136
  %v138 = vsel %vm32, %v137, %v132
  %140 = vrot.lane.b32.xlu0 %v138, 113
  %v141 = vpop.permute.xlu0 %140
  %v143 = vsel %vm41, %v141, 0.0
  %v144 = vld [vmem:[%s3] sm:$0xff]
  %v145 = vld [vmem:[%s3 + $0x8] sm:$0xff]
  %v146 = vpack.c.bf16 %v145, %v144
  %v147 = vpack.c.bf16 %v143, %v143
  %s148 = scalar_lea.vmem %s3, 16
  %v149 = vld [vmem:[%s148] sm:$0xff]
  %v150 = vld [vmem:[%s148 + $0x8] sm:$0xff]
  %v151 = vpack.c.bf16 %v150, %v149
  %v152 = vpack.c.bf16 %v132, %v132
  %vm153 = vcmask 64512
  %v155 = vsel %vm153, %v151, 0
  %vm157 = vcmask 1043456
  %v159 = vsel %vm157, %v152, 0
  %161 = vmatpush.bf16.msra.mxu0 0
  %162 = vmatpush.bf16.msra.mxu0 0
  %163 = vmatpush.bf16.msra.mxu0 0
  %164 = vmatpush.bf16.msra.mxu0 0
  %165 = vmatpush.bf16.msra.mxu0 0
  %166 = vmatpush.bf16.msra.mxu0 0
  %167 = vmatpush.bf16.msra.mxu0 0
  %168 = vmatpush.bf16.msra.mxu0 %v159
  %169 = vmatmul.bf16.gmra.mxu0 %v155
  %v170 = vpop.f32.mrf.mxu0
  %v171 = vadd.f32 0.0, %v170
  %v172 = vpop.f32.mrf.mxu0
  %v173 = vadd.f32 0.0, %v172
  %174 = vdwg.mxu0
  %v176 = vsel %vm153, %v146, 0
  %v179 = vsel %vm157, %v147, 0
  %181 = vmatpush.bf16.msra.mxu0 0
  %182 = vmatpush.bf16.msra.mxu0 0
  %183 = vmatpush.bf16.msra.mxu0 0
  %184 = vmatpush.bf16.msra.mxu0 0
  %185 = vmatpush.bf16.msra.mxu0 0
  %186 = vmatpush.bf16.msra.mxu0 0
  %187 = vmatpush.bf16.msra.mxu0 0
  %188 = vmatpush.bf16.msra.mxu0 %v179
  %189 = vmatmul.bf16.gmra.mxu0 %v176
  %v190 = vpop.f32.mrf.mxu0
  %v191 = vadd.f32 %v171, %v190
  %v192 = vpop.f32.mrf.mxu0
  %v193 = vadd.f32 %v173, %v192
  %194 = vdwg.mxu0
  %195 = vrot.lane.b32.xlu0 %v138, 127
  %v196 = vpop.permute.xlu0 %195
  %v198 = vsel %vm96, %v196, 0.0
  %s199 = scalar_lea.vmem %s3, 32
  %v200 = vld [vmem:[%s199] sm:$0xff]
  %v201 = vld [vmem:[%s199 + $0x8] sm:$0xff]
  %v202 = vpack.c.bf16 %v201, %v200
  %v203 = vpack.c.bf16 %v198, %v198
  %v205 = vsel %vm153, %v202, 0
  %v208 = vsel %vm157, %v203, 0
  %210 = vmatpush.bf16.msra.mxu0 0
  %211 = vmatpush.bf16.msra.mxu0 0
  %212 = vmatpush.bf16.msra.mxu0 0
  %213 = vmatpush.bf16.msra.mxu0 0
  %214 = vmatpush.bf16.msra.mxu0 0
  %215 = vmatpush.bf16.msra.mxu0 0
  %216 = vmatpush.bf16.msra.mxu0 0
  %217 = vmatpush.bf16.msra.mxu0 %v208
  %218 = vmatmul.bf16.gmra.mxu0 %v205
  %v219 = vpop.f32.mrf.mxu0
  %v220 = vadd.f32 0.0, %v219
  %v221 = vpop.f32.mrf.mxu0
  %v222 = vadd.f32 0.0, %v221
  %223 = vdwg.mxu0
  %v224 = vadd.f32 %v191, %v220
  %v225 = vadd.f32 %v193, %v222
  %v226 = vld [vmem:[%s4] sm:$0xff]
  %v227 = vld [vmem:[%s4 + $0x8] sm:$0xff]
  %229 = vset.pattern.permute.xlu0 0
  %230 = vperm.xlu0 %229, %v226
  %v231 = vpop.permute.xlu0 %230
  %234 = vset.pattern.permute.xlu0 0
  %235 = vperm.xlu0 %234, %v227
  %v236 = vpop.permute.xlu0 %235
  %v238 = vadd.f32 %v224, %v231
  %v239 = vadd.f32 %v225, %v236
  %v240 = vmax.f32 %v238, 0.0
  %v241 = vmax.f32 %v239, 0.0
  %v242 = vld [vmem:[%s5] sm:$0xff]
  %v243 = vld [vmem:[%s5 + $0x8] sm:$0xff]
  %v244 = vmul.f32 %v240, %v242
  %v245 = vmul.f32 %v241, %v243
  %vm246 = vcmask 130048
  %v247 = vsel %vm246, %v244, 0.0
  %v248 = vsel %vm246, %v245, 0.0
  %v249 = vadd.f32 %v247, %v248
  %250 = vadd.xlane.f32.xlu0 %v249
  %v251 = vpop.xlane.xlu0 %250
  %v252 = vrot.slane %v251, 4
  %v253 = vadd.f32 %v251, %v252
  %v254 = vrot.slane %v253, 2
  %v255 = vadd.f32 %v253, %v254
  %v256 = vrot.slane %v255, 1
  %v257 = vadd.f32 %v255, %v256
  %s258 = vtos %v257
  %v259 = vstv %s258
  %s260 = scalar_lea.vmem %s0, 4
  %v261 = vld [vmem:[%s260] sm:$0xf]
  %262 = vrot.lane.b32.xlu0 %v261, 16
  %v263 = vpop.permute.xlu0 %262
  %v264 = vsel %vm32, %v263, %v261
  %265 = vrot.lane.b32.xlu0 %v264, 16
  %v266 = vpop.permute.xlu0 %265
  %v267 = vsel %vm32, %v266, %v261
  %269 = vrot.lane.b32.xlu0 %v267, 113
  %v270 = vpop.permute.xlu0 %269
  %v272 = vsel %vm41, %v270, 0.0
  %v273 = vpack.c.bf16 %v272, %v272
  %v274 = vpack.c.bf16 %v261, %v261
  %v276 = vsel %vm58, %v274, 0
  %278 = vmatpush.bf16.msra.mxu0 0
  %279 = vmatpush.bf16.msra.mxu0 0
  %280 = vmatpush.bf16.msra.mxu0 0
  %281 = vmatpush.bf16.msra.mxu0 0
  %282 = vmatpush.bf16.msra.mxu0 0
  %283 = vmatpush.bf16.msra.mxu0 0
  %284 = vmatpush.bf16.msra.mxu0 0
  %285 = vmatpush.bf16.msra.mxu0 %v276
  %286 = vmatmul.bf16.gmra.mxu0 %v56
  %v287 = vpop.f32.mrf.mxu0
  %v288 = vadd.f32 0.0, %v287
  %v289 = vpop.f32.mrf.mxu0
  %290 = vdwg.mxu0
  %v292 = vsel %vm58, %v273, 0
  %294 = vmatpush.bf16.msra.mxu0 0
  %295 = vmatpush.bf16.msra.mxu0 0
  %296 = vmatpush.bf16.msra.mxu0 0
  %297 = vmatpush.bf16.msra.mxu0 0
  %298 = vmatpush.bf16.msra.mxu0 0
  %299 = vmatpush.bf16.msra.mxu0 0
  %300 = vmatpush.bf16.msra.mxu0 0
  %301 = vmatpush.bf16.msra.mxu0 %v292
  %302 = vmatmul.bf16.gmra.mxu0 %v76
  %v303 = vpop.f32.mrf.mxu0
  %v304 = vadd.f32 %v288, %v303
  %v305 = vpop.f32.mrf.mxu0
  %306 = vdwg.mxu0
  %307 = vrot.lane.b32.xlu0 %v267, 127
  %v308 = vpop.permute.xlu0 %307
  %v310 = vsel %vm96, %v308, 0.0
  %v311 = vpack.c.bf16 %v310, %v310
  %v313 = vsel %vm58, %v311, 0
  %315 = vmatpush.bf16.msra.mxu0 0
  %316 = vmatpush.bf16.msra.mxu0 0
  %317 = vmatpush.bf16.msra.mxu0 0
  %318 = vmatpush.bf16.msra.mxu0 0
  %319 = vmatpush.bf16.msra.mxu0 0
  %320 = vmatpush.bf16.msra.mxu0 0
  %321 = vmatpush.bf16.msra.mxu0 0
  %322 = vmatpush.bf16.msra.mxu0 %v313
  %323 = vmatmul.bf16.gmra.mxu0 %v106
  %v324 = vpop.f32.mrf.mxu0
  %v325 = vadd.f32 0.0, %v324
  %v326 = vpop.f32.mrf.mxu0
  %327 = vdwg.mxu0
  %v328 = vadd.f32 %v304, %v325
  %v329 = vadd.f32 %v328, %v129
  %v330 = vmax.f32 %v329, 0.0
  %331 = vrot.lane.b32.xlu0 %v330, 16
  %v332 = vpop.permute.xlu0 %331
  %v333 = vsel %vm32, %v332, %v330
  %334 = vrot.lane.b32.xlu0 %v333, 16
  %v335 = vpop.permute.xlu0 %334
  %v336 = vsel %vm32, %v335, %v330
  %338 = vrot.lane.b32.xlu0 %v336, 113
  %v339 = vpop.permute.xlu0 %338
  %v341 = vsel %vm41, %v339, 0.0
  %v342 = vpack.c.bf16 %v341, %v341
  %v343 = vpack.c.bf16 %v330, %v330
  %v345 = vsel %vm157, %v343, 0
  %347 = vmatpush.bf16.msra.mxu0 0
  %348 = vmatpush.bf16.msra.mxu0 0
  %349 = vmatpush.bf16.msra.mxu0 0
  %350 = vmatpush.bf16.msra.mxu0 0
  %351 = vmatpush.bf16.msra.mxu0 0
  %352 = vmatpush.bf16.msra.mxu0 0
  %353 = vmatpush.bf16.msra.mxu0 0
  %354 = vmatpush.bf16.msra.mxu0 %v345
  %355 = vmatmul.bf16.gmra.mxu0 %v155
  %v356 = vpop.f32.mrf.mxu0
  %v357 = vadd.f32 0.0, %v356
  %v358 = vpop.f32.mrf.mxu0
  %v359 = vadd.f32 0.0, %v358
  %360 = vdwg.mxu0
  %v362 = vsel %vm157, %v342, 0
  %364 = vmatpush.bf16.msra.mxu0 0
  %365 = vmatpush.bf16.msra.mxu0 0
  %366 = vmatpush.bf16.msra.mxu0 0
  %367 = vmatpush.bf16.msra.mxu0 0
  %368 = vmatpush.bf16.msra.mxu0 0
  %369 = vmatpush.bf16.msra.mxu0 0
  %370 = vmatpush.bf16.msra.mxu0 0
  %371 = vmatpush.bf16.msra.mxu0 %v362
  %372 = vmatmul.bf16.gmra.mxu0 %v176
  %v373 = vpop.f32.mrf.mxu0
  %v374 = vadd.f32 %v357, %v373
  %v375 = vpop.f32.mrf.mxu0
  %v376 = vadd.f32 %v359, %v375
  %377 = vdwg.mxu0
  %378 = vrot.lane.b32.xlu0 %v336, 127
  %v379 = vpop.permute.xlu0 %378
  %v381 = vsel %vm96, %v379, 0.0
  %v382 = vpack.c.bf16 %v381, %v381
  %v384 = vsel %vm157, %v382, 0
  %386 = vmatpush.bf16.msra.mxu0 0
  %387 = vmatpush.bf16.msra.mxu0 0
  %388 = vmatpush.bf16.msra.mxu0 0
  %389 = vmatpush.bf16.msra.mxu0 0
  %390 = vmatpush.bf16.msra.mxu0 0
  %391 = vmatpush.bf16.msra.mxu0 0
  %392 = vmatpush.bf16.msra.mxu0 0
  %393 = vmatpush.bf16.msra.mxu0 %v384
  %394 = vmatmul.bf16.gmra.mxu0 %v205
  %v395 = vpop.f32.mrf.mxu0
  %v396 = vadd.f32 0.0, %v395
  %v397 = vpop.f32.mrf.mxu0
  %v398 = vadd.f32 0.0, %v397
  %399 = vdwg.mxu0
  %v400 = vadd.f32 %v374, %v396
  %v401 = vadd.f32 %v376, %v398
  %v402 = vadd.f32 %v400, %v231
  %v403 = vadd.f32 %v401, %v236
  %v404 = vmax.f32 %v402, 0.0
  %v405 = vmax.f32 %v403, 0.0
  %v406 = vmul.f32 %v404, %v242
  %v407 = vmul.f32 %v405, %v243
  %v408 = vsel %vm246, %v406, 0.0
  %v409 = vsel %vm246, %v407, 0.0
  %v410 = vadd.f32 %v408, %v409
  %411 = vadd.xlane.f32.xlu0 %v410
  %v412 = vpop.xlane.xlu0 %411
  %v413 = vrot.slane %v412, 4
  %v414 = vadd.f32 %v412, %v413
  %v415 = vrot.slane %v414, 2
  %v416 = vadd.f32 %v414, %v415
  %v417 = vrot.slane %v416, 1
  %v418 = vadd.f32 %v416, %v417
  %s419 = vtos %v418
  %v420 = vstv %s419
  %vm421 = vcmask 1040384
  %v422 = vsel %vm421, %v259, %v420
  %v423 = vld [vmem:[#allocation2] sm:$0x1]
  %v425 = vperm.slane %v423, 0
  %v427 = vadd.f32 %v422, %v425
  %vm428 = vcmask 1024
  %429 = vst.msk [vmem:[%s7] sm:$0x3] %vm428, %v427
  // Predicated region
  $region30: #{tpu_custom_call.1} parent=0 // pred_check
    _
  $region31: #{tpu_custom_call.1} parent=0 // pred_check_branch
    %431 = sbr.rel (0) target = $region33
  $region32: #{tpu_custom_call.1} parent=0 // pred_region
    _
  $region33: #{tpu_custom_call.1} parent=0 // pred_fallthru
    _
  // Predicated region
  $region34: #{tpu_custom_call.1} parent=0 // pred_check
    _
  $region35: #{tpu_custom_call.1} parent=0 // pred_check_branch
    %433 = sbr.rel (0) target = $region37
  $region36: #{tpu_custom_call.1} parent=0 // pred_region
    _
  $region37: #{tpu_custom_call.1} parent=0 // pred_fallthru
    _

</llo_original>
